<compile_context>
chip_gen: v5e
topology: v5e:2x2
jax: 0.10.0
libtpu: 0.0.40
codegen_flags: <defaults>
</compile_context>

<pallas_src>
import functools

import jax
import jax.numpy as jnp
from jax.experimental import pallas as pl
from jax.experimental.pallas import tpu as pltpu


def _round_up(x, m):
    return ((x + m - 1) // m) * m


def _actor_kernel(x_ref, w1_ref, b1_ref, w2_ref, b2_ref, w3_ref, b3_ref,
                  bd_ref, out_ref, *, n_weight_out, n_products):
    """One batch tile: 3x (matmul + bias + relu), one fused score matmul against
    the block-diagonal feats^T, per-head argmax, single lane-dense store."""
    cdt = w1_ref.dtype  # MXU compute dtype (bf16)

    x = x_ref[...]
    h1 = jnp.maximum(
        jnp.dot(x, w1_ref[...], preferred_element_type=jnp.float32)
        + b1_ref[...], 0.0).astype(cdt)
    h2 = jnp.maximum(
        jnp.dot(h1, w2_ref[...], preferred_element_type=jnp.float32)
        + b2_ref[...], 0.0).astype(cdt)
    h3 = jnp.maximum(
        jnp.dot(h2, w3_ref[...], preferred_element_type=jnp.float32)
        + b3_ref[...], 0.0).astype(cdt)
    # h3: (TB, W*F)

    # Single fused score matmul: (TB, W*F) @ (W*F, W*P) -> (TB, W*P).
    # Columns [w*P:(w+1)*P] hold head w's scores against all products.
    scores = jnp.dot(h3, bd_ref[...], preferred_element_type=jnp.float32)

    P = n_products
    big = jnp.int32(jnp.iinfo(jnp.int32).max)
    cols = []
    for w in range(n_weight_out):            # static unroll; W is small
        s = scores[:, w * P:(w + 1) * P]     # (TB, P)
        mx = jnp.max(s, axis=-1, keepdims=True)
        lane = jax.lax.broadcasted_iota(jnp.int32, s.shape, 1)
        # first-occurrence argmax (same tie-break as torch/jnp argmax)
        cols.append(jnp.min(jnp.where(s == mx, lane, big),
                            axis=-1, keepdims=True))
    out_ref[...] = jnp.concatenate(cols, axis=1)   # one lane-dense (TB, W) store


def actor_forward(x, params, feats, *, n_weight_out, n_features_out,
                  compute_dtype=jnp.bfloat16, batch_tile=128):
    """x: (B, n_input) f32; feats: (n_products, n_features_out) f32.
    Returns (B, n_weight_out) int32 argmax indices."""
    w1, b1, w2, b2, w3, b3 = params
    B, n_input = x.shape
    n_products = feats.shape[0]
    W, F, P = n_weight_out, n_features_out, n_products
    l1, l2, l3 = w1.shape[1], w2.shape[1], w3.shape[1]

    # --- host-side layout plumbing -----------------------------------------
    # Block-diagonal feats^T (W*F, W*P): lets the per-head scoring run as one
    # MXU matmul with a lane-dense output instead of 8 tiny matmuls.
    featsT = feats.T.astype(compute_dtype)                   # (F, P)
    bd = jnp.kron(jnp.eye(W, dtype=compute_dtype), featsT)   # (W*F, W*P)

    # bf16 operands for the MXU; biases stay f32 for the VPU epilogue.
    xc = x.astype(compute_dtype)
    w1c, w2c, w3c = (w.astype(compute_dtype) for w in (w1, w2, w3))
    b1f, b2f, b3f = (b.astype(jnp.float32) for b in (b1, b2, b3))

    # Batch tiling: pad B to a sublane multiple and tile at <= batch_tile rows.
    TB = min(batch_tile, _round_up(B, 8))
    Bp = _round_up(B, TB)
    if Bp != B:
        xc = jnp.pad(xc, ((0, Bp - B), (0, 0)))
    grid = (Bp // TB,)

    def resident(arr):  # whole array pinned in VMEM, same block every grid step
        return pl.BlockSpec(arr.shape, lambda i: (0, 0))

    # VMEM budget: resident weights + f32 activations + double-buffered tiles.
    resident_bytes = sum(int(a.size) * a.dtype.itemsize
                         for a in (w1c, b1f, w2c, b2f, w3c, b3f, bd))
    act_bytes = TB * (l1 + l2 + l3 + W * P) * 4
    io_bytes = 2 * TB * (n_input * xc.dtype.itemsize + W * 4)
    vmem_limit = int(min(100 << 20,
                         max(32 << 20,
                             2 * (resident_bytes + act_bytes + io_bytes))))
    # TODO(synk): for very large n_input (W2/W3 no longer fit v7x's 64 MiB VMEM)
    # add a K-reduction grid axis ("arbitrary", last) with a VMEM f32 accumulator
    # instead of keeping the full weight matrices resident.

    kernel = functools.partial(_actor_kernel, n_weight_out=W, n_products=P)

    out = pl.pallas_call(
        kernel,
        out_shape=jax.ShapeDtypeStruct((Bp, W), jnp.int32),
        grid=grid,
        in_specs=[
            pl.BlockSpec((TB, n_input), lambda i: (i, 0)),  # x: tiled on batch
            resident(w1c), resident(b1f),
            resident(w2c), resident(b2f),
            resident(w3c), resident(b3f),
            resident(bd),
        ],
        out_specs=pl.BlockSpec((TB, W), lambda i: (i, 0)),
        compiler_params=pltpu.CompilerParams(
            dimension_semantics=("parallel",),
            vmem_limit_bytes=vmem_limit),
    )(xc, w1c, b1f, w2c, b2f, w3c, b3f, bd)

    return out[:B]


def init_actor_params(key, n_input, n_weight_out, n_features_out):
    """Deterministic init mimicking PyTorch Linear (uniform +-1/sqrt(fan_in)).
    Weights stored transposed as (in, out); biases as (1, out)."""
    l1, l2 = 4 * n_input, 8 * n_input
    l3 = n_weight_out * n_features_out
    dims = [(n_input, l1), (l1, l2), (l2, l3)]
    params = []
    for (fan_in, fan_out) in dims:
        key, kw, kb = jax.random.split(key, 3)
        bound = 1.0 / (fan_in ** 0.5)
        W = jax.random.uniform(kw, (fan_in, fan_out), jnp.float32, -bound, bound)
        b = jax.random.uniform(kb, (1, fan_out), jnp.float32, -bound, bound)
        params += [W, b]
    return tuple(params)


def actor_reference(x, params, feats, *, n_weight_out, n_features_out,
                    compute_dtype=jnp.bfloat16):
    """Plain-JAX reference mirroring the kernel's numerics (bf16 operands,
    f32 accumulation).  Returns (argmax indices int32, f32 scores)."""
    w1, b1, w2, b2, w3, b3 = params
    cdt = compute_dtype
    h = jnp.maximum(jnp.dot(x.astype(cdt), w1.astype(cdt),
                            preferred_element_type=jnp.float32)
                    + b1.astype(jnp.float32), 0.0)
    h = jnp.maximum(jnp.dot(h.astype(cdt), w2.astype(cdt),
                            preferred_element_type=jnp.float32)
                    + b2.astype(jnp.float32), 0.0)
    h = jnp.maximum(jnp.dot(h.astype(cdt), w3.astype(cdt),
                            preferred_element_type=jnp.float32)
                    + b3.astype(jnp.float32), 0.0)
    tw = h.astype(cdt).reshape(-1, n_weight_out, n_features_out)
    scores = jnp.einsum('bwf,fp->bwp', tw, feats.T.astype(cdt),
                        preferred_element_type=jnp.float32)
    return jnp.argmax(scores, axis=2).astype(jnp.int32), scores


if __name__ == "__main__":
    # Small shapes consistent with the module's forward:
    B = 2
    N_INPUT = 32
    N_WEIGHT_OUT = 8
    N_FEATURES_OUT = 16
    N_PRODUCTS = 8

    key = jax.random.PRNGKey(0)
    key, kx, kf, kp = jax.random.split(key, 4)

    x = jax.random.normal(kx, (B, N_INPUT), jnp.float32)
    feats = jax.random.normal(kf, (N_PRODUCTS, N_FEATURES_OUT), jnp.float32)
    params = init_actor_params(kp, N_INPUT, N_WEIGHT_OUT, N_FEATURES_OUT)

    out = actor_forward(x, params, feats,
                        n_weight_out=N_WEIGHT_OUT,
                        n_features_out=N_FEATURES_OUT)
    out = jax.block_until_ready(out)

    ref_idx, ref_scores = actor_reference(x, params, feats,
                                          n_weight_out=N_WEIGHT_OUT,
                                          n_features_out=N_FEATURES_OUT)

    assert out.shape == (B, N_WEIGHT_OUT), out.shape
    assert out.dtype == jnp.int32, out.dtype
    assert bool(jnp.all((out >= 0) & (out < N_PRODUCTS)))

    # Exact match expected; tolerate disagreement only on numerically-tied
    # scores (identical bf16 math, but MXU accumulation order can differ
    # between the Mosaic kernel and the XLA reference path).
    chosen = jnp.take_along_axis(ref_scores, out[..., None].astype(jnp.int32),
                                 axis=2)[..., 0]
    best = jnp.max(ref_scores, axis=2)
    tie_ok = jnp.abs(chosen - best) <= 1e-3 * (1.0 + jnp.abs(best))
    assert bool(jnp.all((out == ref_idx) | tie_ok)), (out, ref_idx)

    print("KERNEL_OK")
</pallas_src>

<mosaic_0001>
module attributes {stable_mosaic.version = 11 : i64} {
  func.func @_actor_kernel(%arg0: i32, %arg1: memref<8x32xbf16, #tpu.memory_space<vmem>>, %arg2: memref<32x128xbf16, #tpu.memory_space<vmem>>, %arg3: memref<1x128xf32, #tpu.memory_space<vmem>>, %arg4: memref<128x256xbf16, #tpu.memory_space<vmem>>, %arg5: memref<1x256xf32, #tpu.memory_space<vmem>>, %arg6: memref<256x128xbf16, #tpu.memory_space<vmem>>, %arg7: memref<1x128xf32, #tpu.memory_space<vmem>>, %arg8: memref<128x64xbf16, #tpu.memory_space<vmem>>, %arg9: memref<8x8xi32, #tpu.memory_space<vmem>>) attributes {dimension_semantics = [#tpu.dimension_semantics<parallel>], iteration_bounds = array<i64: 1>, scalar_prefetch = 0 : i64, scratch_operands = 0 : i64, tpu.core_type = #tpu.core_type<tc>, window_params = [{transform_indices = @transform_0, window_bounds = array<i64: 8, 32>}, {pipeline_mode = #tpu.pipeline_mode<synchronous>, transform_indices = @transform_1, window_bounds = array<i64: 32, 128>}, {pipeline_mode = #tpu.pipeline_mode<synchronous>, transform_indices = @transform_2, window_bounds = array<i64: 1, 128>}, {pipeline_mode = #tpu.pipeline_mode<synchronous>, transform_indices = @transform_3, window_bounds = array<i64: 128, 256>}, {pipeline_mode = #tpu.pipeline_mode<synchronous>, transform_indices = @transform_4, window_bounds = array<i64: 1, 256>}, {pipeline_mode = #tpu.pipeline_mode<synchronous>, transform_indices = @transform_5, window_bounds = array<i64: 256, 128>}, {pipeline_mode = #tpu.pipeline_mode<synchronous>, transform_indices = @transform_6, window_bounds = array<i64: 1, 128>}, {pipeline_mode = #tpu.pipeline_mode<synchronous>, transform_indices = @transform_7, window_bounds = array<i64: 128, 64>}, {transform_indices = @transform_8, window_bounds = array<i64: 8, 8>}]} {
    %c0 = arith.constant 0 : index
    %c0_0 = arith.constant 0 : index
    %0 = vector.load %arg1[%c0, %c0_0] : memref<8x32xbf16, #tpu.memory_space<vmem>>, vector<8x32xbf16>
    %c0_1 = arith.constant 0 : index
    %c0_2 = arith.constant 0 : index
    %1 = vector.load %arg2[%c0_1, %c0_2] : memref<32x128xbf16, #tpu.memory_space<vmem>>, vector<32x128xbf16>
    %cst = arith.constant dense<0.000000e+00> : vector<8x128xf32>
    %2 = tpu.matmul %0, %1, %cst {dimension_numbers = #tpu.dot_dimension_numbers<[1], [0], [0], [1], [0, 0, 1, 1], [], []>} : vector<8x32xbf16>, vector<32x128xbf16>, vector<8x128xf32> -> vector<8x128xf32>
    %c0_3 = arith.constant 0 : index
    %c0_4 = arith.constant 0 : index
    %3 = vector.load %arg3[%c0_3, %c0_4] : memref<1x128xf32, #tpu.memory_space<vmem>>, vector<1x128xf32>
    %4 = vector.broadcast %3 : vector<1x128xf32> to vector<8x128xf32>
    %5 = arith.addf %2, %4 : vector<8x128xf32>
    %cst_5 = arith.constant 0.000000e+00 : f32
    %6 = vector.broadcast %cst_5 : f32 to vector<8x128xf32>
    %7 = arith.maximumf %5, %6 : vector<8x128xf32>
    %8 = arith.truncf %7 : vector<8x128xf32> to vector<8x128xbf16>
    %c0_6 = arith.constant 0 : index
    %c0_7 = arith.constant 0 : index
    %9 = vector.load %arg4[%c0_6, %c0_7] : memref<128x256xbf16, #tpu.memory_space<vmem>>, vector<128x256xbf16>
    %cst_8 = arith.constant dense<0.000000e+00> : vector<8x256xf32>
    %10 = tpu.matmul %8, %9, %cst_8 {dimension_numbers = #tpu.dot_dimension_numbers<[1], [0], [0], [1], [0, 0, 1, 1], [], []>} : vector<8x128xbf16>, vector<128x256xbf16>, vector<8x256xf32> -> vector<8x256xf32>
    %c0_9 = arith.constant 0 : index
    %c0_10 = arith.constant 0 : index
    %11 = vector.load %arg5[%c0_9, %c0_10] : memref<1x256xf32, #tpu.memory_space<vmem>>, vector<1x256xf32>
    %12 = vector.broadcast %11 : vector<1x256xf32> to vector<8x256xf32>
    %13 = arith.addf %10, %12 : vector<8x256xf32>
    %cst_11 = arith.constant 0.000000e+00 : f32
    %14 = vector.broadcast %cst_11 : f32 to vector<8x256xf32>
    %15 = arith.maximumf %13, %14 : vector<8x256xf32>
    %16 = arith.truncf %15 : vector<8x256xf32> to vector<8x256xbf16>
    %c0_12 = arith.constant 0 : index
    %c0_13 = arith.constant 0 : index
    %17 = vector.load %arg6[%c0_12, %c0_13] : memref<256x128xbf16, #tpu.memory_space<vmem>>, vector<256x128xbf16>
    %cst_14 = arith.constant dense<0.000000e+00> : vector<8x128xf32>
    %18 = tpu.matmul %16, %17, %cst_14 {dimension_numbers = #tpu.dot_dimension_numbers<[1], [0], [0], [1], [0, 0, 1, 1], [], []>} : vector<8x256xbf16>, vector<256x128xbf16>, vector<8x128xf32> -> vector<8x128xf32>
    %c0_15 = arith.constant 0 : index
    %c0_16 = arith.constant 0 : index
    %19 = vector.load %arg7[%c0_15, %c0_16] : memref<1x128xf32, #tpu.memory_space<vmem>>, vector<1x128xf32>
    %20 = vector.broadcast %19 : vector<1x128xf32> to vector<8x128xf32>
    %21 = arith.addf %18, %20 : vector<8x128xf32>
    %cst_17 = arith.constant 0.000000e+00 : f32
    %22 = vector.broadcast %cst_17 : f32 to vector<8x128xf32>
    %23 = arith.maximumf %21, %22 : vector<8x128xf32>
    %24 = arith.truncf %23 : vector<8x128xf32> to vector<8x128xbf16>
    %c0_18 = arith.constant 0 : index
    %c0_19 = arith.constant 0 : index
    %25 = vector.load %arg8[%c0_18, %c0_19] : memref<128x64xbf16, #tpu.memory_space<vmem>>, vector<128x64xbf16>
    %cst_20 = arith.constant dense<0.000000e+00> : vector<8x64xf32>
    %26 = tpu.matmul %24, %25, %cst_20 {dimension_numbers = #tpu.dot_dimension_numbers<[1], [0], [0], [1], [0, 0, 1, 1], [], []>} : vector<8x128xbf16>, vector<128x64xbf16>, vector<8x64xf32> -> vector<8x64xf32>
    %27 = vector.extract_strided_slice %26 {offsets = [0, 0], sizes = [8, 8], strides = [1, 1]} : vector<8x64xf32> to vector<8x8xf32>
    %cst_21 = arith.constant dense<0xFF800000> : vector<8xf32>
    %28 = vector.multi_reduction <maximumf>, %27, %cst_21 [1] : vector<8x8xf32> to vector<8xf32>
    %29 = vector.shape_cast %28 : vector<8xf32> to vector<8x1xf32>
    %30 = tpu.iota {dimensions = array<i32: 1>} : vector<8x8xi32>
    %31 = vector.broadcast %29 : vector<8x1xf32> to vector<8x8xf32>
    %32 = arith.cmpf oeq, %27, %31 : vector<8x8xf32>
    %c2147483647_i32 = arith.constant 2147483647 : i32
    %33 = vector.broadcast %c2147483647_i32 : i32 to vector<8x8xi32>
    %34 = arith.select %32, %30, %33 : vector<8x8xi1>, vector<8x8xi32>
    %cst_22 = arith.constant dense<2147483647> : vector<8xi32>
    %35 = vector.multi_reduction <minsi>, %34, %cst_22 [1] : vector<8x8xi32> to vector<8xi32>
    %36 = vector.shape_cast %35 : vector<8xi32> to vector<8x1xi32>
    %37 = vector.extract_strided_slice %26 {offsets = [0, 8], sizes = [8, 8], strides = [1, 1]} : vector<8x64xf32> to vector<8x8xf32>
    %cst_23 = arith.constant dense<0xFF800000> : vector<8xf32>
    %38 = vector.multi_reduction <maximumf>, %37, %cst_23 [1] : vector<8x8xf32> to vector<8xf32>
    %39 = vector.shape_cast %38 : vector<8xf32> to vector<8x1xf32>
    %40 = tpu.iota {dimensions = array<i32: 1>} : vector<8x8xi32>
    %41 = vector.broadcast %39 : vector<8x1xf32> to vector<8x8xf32>
    %42 = arith.cmpf oeq, %37, %41 : vector<8x8xf32>
    %c2147483647_i32_24 = arith.constant 2147483647 : i32
    %43 = vector.broadcast %c2147483647_i32_24 : i32 to vector<8x8xi32>
    %44 = arith.select %42, %40, %43 : vector<8x8xi1>, vector<8x8xi32>
    %cst_25 = arith.constant dense<2147483647> : vector<8xi32>
    %45 = vector.multi_reduction <minsi>, %44, %cst_25 [1] : vector<8x8xi32> to vector<8xi32>
    %46 = vector.shape_cast %45 : vector<8xi32> to vector<8x1xi32>
    %47 = vector.extract_strided_slice %26 {offsets = [0, 16], sizes = [8, 8], strides = [1, 1]} : vector<8x64xf32> to vector<8x8xf32>
    %cst_26 = arith.constant dense<0xFF800000> : vector<8xf32>
    %48 = vector.multi_reduction <maximumf>, %47, %cst_26 [1] : vector<8x8xf32> to vector<8xf32>
    %49 = vector.shape_cast %48 : vector<8xf32> to vector<8x1xf32>
    %50 = tpu.iota {dimensions = array<i32: 1>} : vector<8x8xi32>
    %51 = vector.broadcast %49 : vector<8x1xf32> to vector<8x8xf32>
    %52 = arith.cmpf oeq, %47, %51 : vector<8x8xf32>
    %c2147483647_i32_27 = arith.constant 2147483647 : i32
    %53 = vector.broadcast %c2147483647_i32_27 : i32 to vector<8x8xi32>
    %54 = arith.select %52, %50, %53 : vector<8x8xi1>, vector<8x8xi32>
    %cst_28 = arith.constant dense<2147483647> : vector<8xi32>
    %55 = vector.multi_reduction <minsi>, %54, %cst_28 [1] : vector<8x8xi32> to vector<8xi32>
    %56 = vector.shape_cast %55 : vector<8xi32> to vector<8x1xi32>
    %57 = vector.extract_strided_slice %26 {offsets = [0, 24], sizes = [8, 8], strides = [1, 1]} : vector<8x64xf32> to vector<8x8xf32>
    %cst_29 = arith.constant dense<0xFF800000> : vector<8xf32>
    %58 = vector.multi_reduction <maximumf>, %57, %cst_29 [1] : vector<8x8xf32> to vector<8xf32>
    %59 = vector.shape_cast %58 : vector<8xf32> to vector<8x1xf32>
    %60 = tpu.iota {dimensions = array<i32: 1>} : vector<8x8xi32>
    %61 = vector.broadcast %59 : vector<8x1xf32> to vector<8x8xf32>
    %62 = arith.cmpf oeq, %57, %61 : vector<8x8xf32>
    %c2147483647_i32_30 = arith.constant 2147483647 : i32
    %63 = vector.broadcast %c2147483647_i32_30 : i32 to vector<8x8xi32>
    %64 = arith.select %62, %60, %63 : vector<8x8xi1>, vector<8x8xi32>
    %cst_31 = arith.constant dense<2147483647> : vector<8xi32>
    %65 = vector.multi_reduction <minsi>, %64, %cst_31 [1] : vector<8x8xi32> to vector<8xi32>
    %66 = vector.shape_cast %65 : vector<8xi32> to vector<8x1xi32>
    %67 = vector.extract_strided_slice %26 {offsets = [0, 32], sizes = [8, 8], strides = [1, 1]} : vector<8x64xf32> to vector<8x8xf32>
    %cst_32 = arith.constant dense<0xFF800000> : vector<8xf32>
    %68 = vector.multi_reduction <maximumf>, %67, %cst_32 [1] : vector<8x8xf32> to vector<8xf32>
    %69 = vector.shape_cast %68 : vector<8xf32> to vector<8x1xf32>
    %70 = tpu.iota {dimensions = array<i32: 1>} : vector<8x8xi32>
    %71 = vector.broadcast %69 : vector<8x1xf32> to vector<8x8xf32>
    %72 = arith.cmpf oeq, %67, %71 : vector<8x8xf32>
    %c2147483647_i32_33 = arith.constant 2147483647 : i32
    %73 = vector.broadcast %c2147483647_i32_33 : i32 to vector<8x8xi32>
    %74 = arith.select %72, %70, %73 : vector<8x8xi1>, vector<8x8xi32>
    %cst_34 = arith.constant dense<2147483647> : vector<8xi32>
    %75 = vector.multi_reduction <minsi>, %74, %cst_34 [1] : vector<8x8xi32> to vector<8xi32>
    %76 = vector.shape_cast %75 : vector<8xi32> to vector<8x1xi32>
    %77 = vector.extract_strided_slice %26 {offsets = [0, 40], sizes = [8, 8], strides = [1, 1]} : vector<8x64xf32> to vector<8x8xf32>
    %cst_35 = arith.constant dense<0xFF800000> : vector<8xf32>
    %78 = vector.multi_reduction <maximumf>, %77, %cst_35 [1] : vector<8x8xf32> to vector<8xf32>
    %79 = vector.shape_cast %78 : vector<8xf32> to vector<8x1xf32>
    %80 = tpu.iota {dimensions = array<i32: 1>} : vector<8x8xi32>
    %81 = vector.broadcast %79 : vector<8x1xf32> to vector<8x8xf32>
    %82 = arith.cmpf oeq, %77, %81 : vector<8x8xf32>
    %c2147483647_i32_36 = arith.constant 2147483647 : i32
    %83 = vector.broadcast %c2147483647_i32_36 : i32 to vector<8x8xi32>
    %84 = arith.select %82, %80, %83 : vector<8x8xi1>, vector<8x8xi32>
    %cst_37 = arith.constant dense<2147483647> : vector<8xi32>
    %85 = vector.multi_reduction <minsi>, %84, %cst_37 [1] : vector<8x8xi32> to vector<8xi32>
    %86 = vector.shape_cast %85 : vector<8xi32> to vector<8x1xi32>
    %87 = vector.extract_strided_slice %26 {offsets = [0, 48], sizes = [8, 8], strides = [1, 1]} : vector<8x64xf32> to vector<8x8xf32>
    %cst_38 = arith.constant dense<0xFF800000> : vector<8xf32>
    %88 = vector.multi_reduction <maximumf>, %87, %cst_38 [1] : vector<8x8xf32> to vector<8xf32>
    %89 = vector.shape_cast %88 : vector<8xf32> to vector<8x1xf32>
    %90 = tpu.iota {dimensions = array<i32: 1>} : vector<8x8xi32>
    %91 = vector.broadcast %89 : vector<8x1xf32> to vector<8x8xf32>
    %92 = arith.cmpf oeq, %87, %91 : vector<8x8xf32>
    %c2147483647_i32_39 = arith.constant 2147483647 : i32
    %93 = vector.broadcast %c2147483647_i32_39 : i32 to vector<8x8xi32>
    %94 = arith.select %92, %90, %93 : vector<8x8xi1>, vector<8x8xi32>
    %cst_40 = arith.constant dense<2147483647> : vector<8xi32>
    %95 = vector.multi_reduction <minsi>, %94, %cst_40 [1] : vector<8x8xi32> to vector<8xi32>
    %96 = vector.shape_cast %95 : vector<8xi32> to vector<8x1xi32>
    %97 = vector.extract_strided_slice %26 {offsets = [0, 56], sizes = [8, 8], strides = [1, 1]} : vector<8x64xf32> to vector<8x8xf32>
    %cst_41 = arith.constant dense<0xFF800000> : vector<8xf32>
    %98 = vector.multi_reduction <maximumf>, %97, %cst_41 [1] : vector<8x8xf32> to vector<8xf32>
    %99 = vector.shape_cast %98 : vector<8xf32> to vector<8x1xf32>
    %100 = tpu.iota {dimensions = array<i32: 1>} : vector<8x8xi32>
    %101 = vector.broadcast %99 : vector<8x1xf32> to vector<8x8xf32>
    %102 = arith.cmpf oeq, %97, %101 : vector<8x8xf32>
    %c2147483647_i32_42 = arith.constant 2147483647 : i32
    %103 = vector.broadcast %c2147483647_i32_42 : i32 to vector<8x8xi32>
    %104 = arith.select %102, %100, %103 : vector<8x8xi1>, vector<8x8xi32>
    %cst_43 = arith.constant dense<2147483647> : vector<8xi32>
    %105 = vector.multi_reduction <minsi>, %104, %cst_43 [1] : vector<8x8xi32> to vector<8xi32>
    %106 = vector.shape_cast %105 : vector<8xi32> to vector<8x1xi32>
    %107 = tpu.concatenate %36, %46, %56, %66, %76, %86, %96, %106 in 1 : vector<8x1xi32>, vector<8x1xi32>, vector<8x1xi32>, vector<8x1xi32>, vector<8x1xi32>, vector<8x1xi32>, vector<8x1xi32>, vector<8x1xi32> -> vector<8x8xi32>
    %c0_44 = arith.constant 0 : index
    %c0_45 = arith.constant 0 : index
    %108 = vector.load %arg9[%c0_44, %c0_45] : memref<8x8xi32, #tpu.memory_space<vmem>>, vector<8x8xi32>
    tpu.vector_store %arg9[%c0_44, %c0_45], %107 {strides = array<i32>} : memref<8x8xi32, #tpu.memory_space<vmem>>, vector<8x8xi32>,
    return
  }
  func.func @transform_0(%arg0: i32) -> (i32, i32) {
    %c0_i32 = arith.constant 0 : i32
    %c0_i32_0 = arith.constant 0 : i32
    return %arg0, %c0_i32 : i32, i32
  }
  func.func @transform_1(%arg0: i32) -> (i32, i32) {
    %c0_i32 = arith.constant 0 : i32
    %c0_i32_0 = arith.constant 0 : i32
    %c0_i32_1 = arith.constant 0 : i32
    return %c0_i32, %c0_i32_0 : i32, i32
  }
  func.func @transform_2(%arg0: i32) -> (i32, i32) {
    %c0_i32 = arith.constant 0 : i32
    %c0_i32_0 = arith.constant 0 : i32
    %c0_i32_1 = arith.constant 0 : i32
    return %c0_i32, %c0_i32_0 : i32, i32
  }
  func.func @transform_3(%arg0: i32) -> (i32, i32) {
    %c0_i32 = arith.constant 0 : i32
    %c0_i32_0 = arith.constant 0 : i32
    %c0_i32_1 = arith.constant 0 : i32
    return %c0_i32, %c0_i32_0 : i32, i32
  }
  func.func @transform_4(%arg0: i32) -> (i32, i32) {
    %c0_i32 = arith.constant 0 : i32
    %c0_i32_0 = arith.constant 0 : i32
    %c0_i32_1 = arith.constant 0 : i32
    return %c0_i32, %c0_i32_0 : i32, i32
  }
  func.func @transform_5(%arg0: i32) -> (i32, i32) {
    %c0_i32 = arith.constant 0 : i32
    %c0_i32_0 = arith.constant 0 : i32
    %c0_i32_1 = arith.constant 0 : i32
    return %c0_i32, %c0_i32_0 : i32, i32
  }
  func.func @transform_6(%arg0: i32) -> (i32, i32) {
    %c0_i32 = arith.constant 0 : i32
    %c0_i32_0 = arith.constant 0 : i32
    %c0_i32_1 = arith.constant 0 : i32
    return %c0_i32, %c0_i32_0 : i32, i32
  }
  func.func @transform_7(%arg0: i32) -> (i32, i32) {
    %c0_i32 = arith.constant 0 : i32
    %c0_i32_0 = arith.constant 0 : i32
    %c0_i32_1 = arith.constant 0 : i32
    return %c0_i32, %c0_i32_0 : i32, i32
  }
  func.func @transform_8(%arg0: i32) -> (i32, i32) {
    %c0_i32 = arith.constant 0 : i32
    %c0_i32_0 = arith.constant 0 : i32
    return %arg0, %c0_i32 : i32, i32
  }
}

</mosaic_0001>

<llo_original>
// kernel: tpu_custom_call.1
$region0: #{tpu_custom_call.1}
  #allocation0 [shape = 'u32[]', space=smem, size = 0x4, offset = 0x4, fixed_abs, tag = 'smem constant byte address 0x4 - core index']
  #allocation1 [shape = 'u32[72,128]{1,0:T(1,128)}', space=vmem, size = 0x9000, scoped, tag = 'internal scratch']
  %s0 = inlined_call_operand.vmem [shape: bf16[8,32], index: 0, kind: input, shape index: {}]
  %s1 = inlined_call_operand.vmem [shape: bf16[32,128], index: 1, kind: input, shape index: {}]
  %s2 = inlined_call_operand.vmem [shape: f32[1,128], index: 2, kind: input, shape index: {}]
  %s3 = inlined_call_operand.hbm [shape: bf16[128,256], index: 3, kind: input, shape index: {}]
  %s4 = inlined_call_operand.vmem [shape: f32[1,256], index: 4, kind: input, shape index: {}]
  %s5 = inlined_call_operand.hbm [shape: bf16[256,128], index: 5, kind: input, shape index: {}]
  %s6 = inlined_call_operand.vmem [shape: f32[1,128], index: 6, kind: input, shape index: {}]
  %s7 = inlined_call_operand.vmem [shape: bf16[128,64], index: 7, kind: input, shape index: {}]
  %s8 = inlined_call_operand.hbm [shape: s32[8,8], index: 8, kind: output, shape index: {}]
  %s9 = sld [smem:[#allocation0]]
  $region50: #{tpu_custom_call.1} parent=0
    _
  %s11 = ssub.s32 1, %s9
  %s12 = scalar_select 0, %s11, %s9
  $region1: #{tpu_custom_call.1} parent=0
    #allocation2 [shape = 'u8[65536]{0}', space=vmem, size = 0x10000, scoped, tag = 'input window, operand 3, single buffered']
    #allocation3 [shape = 's32[1]{0}', space=sflag, size = 0x4, scoped, tag = 'scoped memory for tpu_custom_call.1']
    #allocation4 [shape = 's32[1]{0}', space=sflag, size = 0x4, scoped, tag = 'scoped memory for tpu_custom_call.1']
    #allocation5 [shape = 'u8[65536]{0}', space=vmem, size = 0x10000, scoped, tag = 'input window, operand 5, single buffered']
    #allocation6 [shape = 's32[1]{0}', space=sflag, size = 0x4, scoped, tag = 'scoped memory for tpu_custom_call.1']
    #allocation7 [shape = 'u8[4096]{0}', space=vmem, size = 0x1000, scoped, tag = 'output window, operand 0, single buffered']
    %13 = vsyncpa [#allocation3], 0
    %14 = vsyncpa [#allocation6], 0
    %15 = vsyncpa [#allocation4], 0
    // Predicated region
    $region2: #{tpu_custom_call.1} parent=1 // pred_check
      _
    $region3: #{tpu_custom_call.1} parent=1 // pred_check_branch
      %17 = sbr.rel (0) target = $region5
    $region4: #{tpu_custom_call.1} parent=1 // pred_region
      _
    $region5: #{tpu_custom_call.1} parent=1 // pred_fallthru
      _
    // Predicated region
    $region6: #{tpu_custom_call.1} parent=1 // pred_check
      _
    $region7: #{tpu_custom_call.1} parent=1 // pred_check_branch
      %19 = sbr.rel (0) target = $region9
    $region8: #{tpu_custom_call.1} parent=1 // pred_region
      _
    $region9: #{tpu_custom_call.1} parent=1 // pred_fallthru
      _
    // Predicated region
    $region10: #{tpu_custom_call.1} parent=1 // pred_check
      _
    $region11: #{tpu_custom_call.1} parent=1 // pred_check_branch
      %21 = sbr.rel (0) target = $region13
    $region12: #{tpu_custom_call.1} parent=1 // pred_region
      _
    $region13: #{tpu_custom_call.1} parent=1 // pred_fallthru
      _
    // Predicated region
    $region14: #{tpu_custom_call.1} parent=1 // pred_check
      _
    $region15: #{tpu_custom_call.1} parent=1 // pred_check_branch
      %23 = sbr.rel (0) target = $region17
    $region16: #{tpu_custom_call.1} parent=1 // pred_region
      %25 = vsyncadd [#allocation3], 0
      %s26 = sshll.u32 %s3, 4
      %s27 = int_to_ptr.hbm [resolvable:$true] %s26
      %s28 = sshll.u32 [#allocation2], 4
      %s29 = int_to_ptr.vmem [resolvable:$true] %s28
      %34 = dma.hbm_to_vmem [thread:$0]  %s27, 2048, %s29, [#allocation3], 128, 128, 8
    $region17: #{tpu_custom_call.1} parent=1 // pred_fallthru
      _
    // Predicated region
    $region18: #{tpu_custom_call.1} parent=1 // pred_check
      _
    $region19: #{tpu_custom_call.1} parent=1 // pred_check_branch
      %36 = sbr.rel (0) target = $region21
    $region20: #{tpu_custom_call.1} parent=1 // pred_region
      _
    $region21: #{tpu_custom_call.1} parent=1 // pred_fallthru
      _
    // Predicated region
    $region22: #{tpu_custom_call.1} parent=1 // pred_check
      _
    $region23: #{tpu_custom_call.1} parent=1 // pred_check_branch
      %38 = sbr.rel (0) target = $region25
    $region24: #{tpu_custom_call.1} parent=1 // pred_region
      %40 = vsyncadd [#allocation6], 0
      %s41 = sshll.u32 %s5, 4
      %s42 = int_to_ptr.hbm [resolvable:$true] %s41
      %s43 = sshll.u32 [#allocation5], 4
      %s44 = int_to_ptr.vmem [resolvable:$true] %s43
      %49 = dma.hbm_to_vmem [thread:$0]  %s42, 2048, %s44, [#allocation6], 64, 64, 4
    $region25: #{tpu_custom_call.1} parent=1 // pred_fallthru
      _
    // Predicated region
    $region26: #{tpu_custom_call.1} parent=1 // pred_check
      _
    $region27: #{tpu_custom_call.1} parent=1 // pred_check_branch
      %51 = sbr.rel (0) target = $region29
    $region28: #{tpu_custom_call.1} parent=1 // pred_region
      _
    $region29: #{tpu_custom_call.1} parent=1 // pred_fallthru
      _
    // Predicated region
    $region30: #{tpu_custom_call.1} parent=1 // pred_check
      _
    $region31: #{tpu_custom_call.1} parent=1 // pred_check_branch
      %53 = sbr.rel (0) target = $region33
    $region32: #{tpu_custom_call.1} parent=1 // pred_region
      _
    $region33: #{tpu_custom_call.1} parent=1 // pred_fallthru
      _
    // Predicated region
    $region34: #{tpu_custom_call.1} parent=1 // pred_check
      _
    $region35: #{tpu_custom_call.1} parent=1 // pred_check_branch
      %55 = sbr.rel (0) target = $region37
    $region36: #{tpu_custom_call.1} parent=1 // pred_region
      %57 = dma.done [#allocation3], 2048
    $region37: #{tpu_custom_call.1} parent=1 // pred_fallthru
      _
    // Predicated region
    $region38: #{tpu_custom_call.1} parent=1 // pred_check
      _
    $region39: #{tpu_custom_call.1} parent=1 // pred_check_branch
      %59 = sbr.rel (0) target = $region41
    $region40: #{tpu_custom_call.1} parent=1 // pred_region
      %61 = dma.done [#allocation6], 2048
    $region41: #{tpu_custom_call.1} parent=1 // pred_fallthru
      _
    %v63 = vld [vmem:[%s0] sm:$0xf]
    %v64 = vld [vmem:[%s1] sm:$0xf]
    %v65 = vld [vmem:[%s1 + $0x4] sm:$0xf]
    %v66 = vld [vmem:[%s1 + $0x8] sm:$0xf]
    %v67 = vld [vmem:[%s1 + $0xc] sm:$0xf]
    %v68 = vld [vmem:[%s2] sm:$0x1]
    %v70 = vperm.slane %v68, 0
    %v76 = vunpack.c.l.b16 %v64
    %v77 = vunpack.c.l.b16 %v65
    %v78 = vunpack.c.l.b16 %v66
    %v79 = vunpack.c.l.b16 %v67
    %v80 = vpack.c.b16 %v77, %v76
    %v81 = vpack.c.b16 %v79, %v78
    %vm84 = vcmask 261120
    %v86 = vsel %vm84, %v63, 0
    %88 = vmatpush.bf16.msra.mxu0 0
    %89 = vmatpush.bf16.msra.mxu0 0
    %90 = vmatpush.bf16.msra.mxu0 0
    %91 = vmatpush.bf16.msra.mxu0 0
    %92 = vmatpush.bf16.msra.mxu0 0
    %93 = vmatpush.bf16.msra.mxu0 0
    %94 = vmatpush.bf16.msra.mxu0 %v81
    %95 = vmatpush.bf16.msra.mxu0 %v80
    %96 = vmatmul.bf16.gmra.mxu0 %v86
    %v97 = vpop.f32.mrf.mxu0
    %v98 = vadd.f32 %v70, %v97
    %v99 = vpop.f32.mrf.mxu0
    %100 = vdwg.mxu0
    %v101 = vmax.f32 %v98, 0.0
    %v102 = vpack.c.bf16 %v101, %v101
    %v103 = vld [vmem:[#allocation2] sm:$0xff]
    %v104 = vld [vmem:[#allocation2 + $0x8] sm:$0xff]
    %v105 = vld [vmem:[#allocation2 + $0x10] sm:$0xff]
    %v106 = vld [vmem:[#allocation2 + $0x18] sm:$0xff]
    %v107 = vld [vmem:[#allocation2 + $0x20] sm:$0xff]
    %v108 = vld [vmem:[#allocation2 + $0x28] sm:$0xff]
    %v109 = vld [vmem:[#allocation2 + $0x30] sm:$0xff]
    %v110 = vld [vmem:[#allocation2 + $0x38] sm:$0xff]
    %v111 = vld [vmem:[#allocation2 + $0x40] sm:$0xff]
    %v112 = vld [vmem:[#allocation2 + $0x48] sm:$0xff]
    %v113 = vld [vmem:[#allocation2 + $0x50] sm:$0xff]
    %v114 = vld [vmem:[#allocation2 + $0x58] sm:$0xff]
    %v115 = vld [vmem:[#allocation2 + $0x60] sm:$0xff]
    %v116 = vld [vmem:[#allocation2 + $0x68] sm:$0xff]
    %v117 = vld [vmem:[#allocation2 + $0x70] sm:$0xff]
    %v118 = vld [vmem:[#allocation2 + $0x78] sm:$0xff]
    %v119 = vld [vmem:[%s4] sm:$0x3]
    %v121 = vperm.slane %v119, 0
    %v122 = vperm.slane %v119, 1
    %v141 = vunpack.c.l.b16 %v103
    %v142 = vunpack.c.h.b16 %v103
    %v143 = vunpack.c.l.b16 %v104
    %v144 = vunpack.c.h.b16 %v104
    %v145 = vunpack.c.l.b16 %v105
    %v146 = vunpack.c.h.b16 %v105
    %v147 = vunpack.c.l.b16 %v106
    %v148 = vunpack.c.h.b16 %v106
    %v149 = vunpack.c.l.b16 %v107
    %v150 = vunpack.c.h.b16 %v107
    %v151 = vunpack.c.l.b16 %v108
    %v152 = vunpack.c.h.b16 %v108
    %v153 = vunpack.c.l.b16 %v109
    %v154 = vunpack.c.h.b16 %v109
    %v155 = vunpack.c.l.b16 %v110
    %v156 = vunpack.c.h.b16 %v110
    %v157 = vunpack.c.l.b16 %v111
    %v158 = vunpack.c.h.b16 %v111
    %v159 = vunpack.c.l.b16 %v112
    %v160 = vunpack.c.h.b16 %v112
    %v161 = vunpack.c.l.b16 %v113
    %v162 = vunpack.c.h.b16 %v113
    %v163 = vunpack.c.l.b16 %v114
    %v164 = vunpack.c.h.b16 %v114
    %v165 = vunpack.c.l.b16 %v115
    %v166 = vunpack.c.h.b16 %v115
    %v167 = vunpack.c.l.b16 %v116
    %v168 = vunpack.c.h.b16 %v116
    %v169 = vunpack.c.l.b16 %v117
    %v170 = vunpack.c.h.b16 %v117
    %v171 = vunpack.c.l.b16 %v118
    %v172 = vunpack.c.h.b16 %v118
    %v173 = vpack.c.b16 %v143, %v141
    %v174 = vpack.c.b16 %v144, %v142
    %v175 = vpack.c.b16 %v147, %v145
    %v176 = vpack.c.b16 %v148, %v146
    %v177 = vpack.c.b16 %v151, %v149
    %v178 = vpack.c.b16 %v152, %v150
    %v179 = vpack.c.b16 %v155, %v153
    %v180 = vpack.c.b16 %v156, %v154
    %v181 = vpack.c.b16 %v159, %v157
    %v182 = vpack.c.b16 %v160, %v158
    %v183 = vpack.c.b16 %v163, %v161
    %v184 = vpack.c.b16 %v164, %v162
    %v185 = vpack.c.b16 %v167, %v165
    %v186 = vpack.c.b16 %v168, %v166
    %v187 = vpack.c.b16 %v171, %v169
    %v188 = vpack.c.b16 %v172, %v170
    %205 = vmatpush.bf16.msra.mxu0 %v187
    %206 = vmatpush.bf16.msra.mxu0 %v185
    %207 = vmatpush.bf16.msra.mxu0 %v183
    %208 = vmatpush.bf16.msra.mxu0 %v181
    %209 = vmatpush.bf16.msra.mxu0 %v179
    %210 = vmatpush.bf16.msra.mxu0 %v177
    %211 = vmatpush.bf16.msra.mxu0 %v175
    %212 = vmatpush.bf16.msra.mxu0 %v173
    %213 = vmatmul.bf16.gmra.mxu0 %v102
    %v214 = vpop.f32.mrf.mxu0
    %v215 = vadd.f32 %v121, %v214
    %v216 = vpop.f32.mrf.mxu0
    %217 = vdwg.mxu0
    %218 = vmatpush.bf16.msra.mxu0 %v188
    %219 = vmatpush.bf16.msra.mxu0 %v186
    %220 = vmatpush.bf16.msra.mxu0 %v184
    %221 = vmatpush.bf16.msra.mxu0 %v182
    %222 = vmatpush.bf16.msra.mxu0 %v180
    %223 = vmatpush.bf16.msra.mxu0 %v178
    %224 = vmatpush.bf16.msra.mxu0 %v176
    %225 = vmatpush.bf16.msra.mxu0 %v174
    %226 = vmatmul.bf16.gmra.mxu0 %v102
    %v227 = vpop.f32.mrf.mxu0
    %v228 = vadd.f32 %v122, %v227
    %v229 = vpop.f32.mrf.mxu0
    %230 = vdwg.mxu0
    %v231 = vmax.f32 %v215, 0.0
    %v232 = vmax.f32 %v228, 0.0
    %v233 = vpack.c.bf16 %v231, %v231
    %v234 = vpack.c.bf16 %v232, %v232
    %v235 = vld [vmem:[#allocation5] sm:$0xf]
    %v236 = vld [vmem:[#allocation5 + $0x4] sm:$0xf]
    %v237 = vld [vmem:[#allocation5 + $0x8] sm:$0xf]
    %v238 = vld [vmem:[#allocation5 + $0xc] sm:$0xf]
    %v239 = vld [vmem:[#allocation5 + $0x10] sm:$0xf]
    %v240 = vld [vmem:[#allocation5 + $0x14] sm:$0xf]
    %v241 = vld [vmem:[#allocation5 + $0x18] sm:$0xf]
    %v242 = vld [vmem:[#allocation5 + $0x1c] sm:$0xf]
    %v243 = vld [vmem:[#allocation5 + $0x20] sm:$0xf]
    %v244 = vld [vmem:[#allocation5 + $0x24] sm:$0xf]
    %v245 = vld [vmem:[#allocation5 + $0x28] sm:$0xf]
    %v246 = vld [vmem:[#allocation5 + $0x2c] sm:$0xf]
    %v247 = vld [vmem:[#allocation5 + $0x30] sm:$0xf]
    %v248 = vld [vmem:[#allocation5 + $0x34] sm:$0xf]
    %v249 = vld [vmem:[#allocation5 + $0x38] sm:$0xf]
    %v250 = vld [vmem:[#allocation5 + $0x3c] sm:$0xf]
    %v251 = vld [vmem:[#allocation5 + $0x40] sm:$0xf]
    %v252 = vld [vmem:[#allocation5 + $0x44] sm:$0xf]
    %v253 = vld [vmem:[#allocation5 + $0x48] sm:$0xf]
    %v254 = vld [vmem:[#allocation5 + $0x4c] sm:$0xf]
    %v255 = vld [vmem:[#allocation5 + $0x50] sm:$0xf]
    %v256 = vld [vmem:[#allocation5 + $0x54] sm:$0xf]
    %v257 = vld [vmem:[#allocation5 + $0x58] sm:$0xf]
    %v258 = vld [vmem:[#allocation5 + $0x5c] sm:$0xf]
    %v259 = vld [vmem:[#allocation5 + $0x60] sm:$0xf]
    %v260 = vld [vmem:[#allocation5 + $0x64] sm:$0xf]
    %v261 = vld [vmem:[#allocation5 + $0x68] sm:$0xf]
    %v262 = vld [vmem:[#allocation5 + $0x6c] sm:$0xf]
    %v263 = vld [vmem:[#allocation5 + $0x70] sm:$0xf]
    %v264 = vld [vmem:[#allocation5 + $0x74] sm:$0xf]
    %v265 = vld [vmem:[#allocation5 + $0x78] sm:$0xf]
    %v266 = vld [vmem:[#allocation5 + $0x7c] sm:$0xf]
    %v267 = vld [vmem:[%s6] sm:$0x1]
    %v269 = vperm.slane %v267, 0
    %v303 = vunpack.c.l.b16 %v235
    %v304 = vunpack.c.l.b16 %v236
    %v305 = vunpack.c.l.b16 %v237
    %v306 = vunpack.c.l.b16 %v238
    %v307 = vunpack.c.l.b16 %v239
    %v308 = vunpack.c.l.b16 %v240
    %v309 = vunpack.c.l.b16 %v241
    %v310 = vunpack.c.l.b16 %v242
    %v311 = vunpack.c.l.b16 %v243
    %v312 = vunpack.c.l.b16 %v244
    %v313 = vunpack.c.l.b16 %v245
    %v314 = vunpack.c.l.b16 %v246
    %v315 = vunpack.c.l.b16 %v247
    %v316 = vunpack.c.l.b16 %v248
    %v317 = vunpack.c.l.b16 %v249
    %v318 = vunpack.c.l.b16 %v250
    %v319 = vunpack.c.l.b16 %v251
    %v320 = vunpack.c.l.b16 %v252
    %v321 = vunpack.c.l.b16 %v253
    %v322 = vunpack.c.l.b16 %v254
    %v323 = vunpack.c.l.b16 %v255
    %v324 = vunpack.c.l.b16 %v256
    %v325 = vunpack.c.l.b16 %v257
    %v326 = vunpack.c.l.b16 %v258
    %v327 = vunpack.c.l.b16 %v259
    %v328 = vunpack.c.l.b16 %v260
    %v329 = vunpack.c.l.b16 %v261
    %v330 = vunpack.c.l.b16 %v262
    %v331 = vunpack.c.l.b16 %v263
    %v332 = vunpack.c.l.b16 %v264
    %v333 = vunpack.c.l.b16 %v265
    %v334 = vunpack.c.l.b16 %v266
    %v335 = vpack.c.b16 %v304, %v303
    %v336 = vpack.c.b16 %v306, %v305
    %v337 = vpack.c.b16 %v308, %v307
    %v338 = vpack.c.b16 %v310, %v309
    %v339 = vpack.c.b16 %v312, %v311
    %v340 = vpack.c.b16 %v314, %v313
    %v341 = vpack.c.b16 %v316, %v315
    %v342 = vpack.c.b16 %v318, %v317
    %v343 = vpack.c.b16 %v320, %v319
    %v344 = vpack.c.b16 %v322, %v321
    %v345 = vpack.c.b16 %v324, %v323
    %v346 = vpack.c.b16 %v326, %v325
    %v347 = vpack.c.b16 %v328, %v327
    %v348 = vpack.c.b16 %v330, %v329
    %v349 = vpack.c.b16 %v332, %v331
    %v350 = vpack.c.b16 %v334, %v333
    %367 = vmatpush.bf16.msra.mxu0 %v342
    %368 = vmatpush.bf16.msra.mxu0 %v341
    %369 = vmatpush.bf16.msra.mxu0 %v340
    %370 = vmatpush.bf16.msra.mxu0 %v339
    %371 = vmatpush.bf16.msra.mxu0 %v338
    %372 = vmatpush.bf16.msra.mxu0 %v337
    %373 = vmatpush.bf16.msra.mxu0 %v336
    %374 = vmatpush.bf16.msra.mxu0 %v335
    %375 = vmatmul.bf16.gmra.mxu0 %v233
    %v376 = vpop.f32.mrf.mxu0
    %v377 = vadd.f32 %v269, %v376
    %v378 = vpop.f32.mrf.mxu0
    %379 = vdwg.mxu0
    %380 = vmatpush.bf16.msra.mxu0 %v350
    %381 = vmatpush.bf16.msra.mxu0 %v349
    %382 = vmatpush.bf16.msra.mxu0 %v348
    %383 = vmatpush.bf16.msra.mxu0 %v347
    %384 = vmatpush.bf16.msra.mxu0 %v346
    %385 = vmatpush.bf16.msra.mxu0 %v345
    %386 = vmatpush.bf16.msra.mxu0 %v344
    %387 = vmatpush.bf16.msra.mxu0 %v343
    %388 = vmatmul.bf16.gmra.mxu0 %v234
    %v389 = vpop.f32.mrf.mxu0
    %v390 = vadd.f32 %v377, %v389
    %v391 = vpop.f32.mrf.mxu0
    %392 = vdwg.mxu0
    %v393 = vmax.f32 %v390, 0.0
    %v394 = vpack.c.bf16 %v393, %v393
    %v395 = vld [vmem:[%s7] sm:$0xf]
    %v396 = vld [vmem:[%s7 + $0x4] sm:$0xf]
    %v397 = vld [vmem:[%s7 + $0x8] sm:$0xf]
    %v398 = vld [vmem:[%s7 + $0xc] sm:$0xf]
    %v399 = vld [vmem:[%s7 + $0x10] sm:$0xf]
    %v400 = vld [vmem:[%s7 + $0x14] sm:$0xf]
    %v401 = vld [vmem:[%s7 + $0x18] sm:$0xf]
    %v402 = vld [vmem:[%s7 + $0x1c] sm:$0xf]
    %v403 = vld [vmem:[%s7 + $0x20] sm:$0xf]
    %v404 = vld [vmem:[%s7 + $0x24] sm:$0xf]
    %v405 = vld [vmem:[%s7 + $0x28] sm:$0xf]
    %v406 = vld [vmem:[%s7 + $0x2c] sm:$0xf]
    %v407 = vld [vmem:[%s7 + $0x30] sm:$0xf]
    %v408 = vld [vmem:[%s7 + $0x34] sm:$0xf]
    %v409 = vld [vmem:[%s7 + $0x38] sm:$0xf]
    %v410 = vld [vmem:[%s7 + $0x3c] sm:$0xf]
    %v427 = vunpack.c.l.b16 %v395
    %v428 = vunpack.c.l.b16 %v396
    %v429 = vunpack.c.l.b16 %v397
    %v430 = vunpack.c.l.b16 %v398
    %v431 = vunpack.c.l.b16 %v399
    %v432 = vunpack.c.l.b16 %v400
    %v433 = vunpack.c.l.b16 %v401
    %v434 = vunpack.c.l.b16 %v402
    %v435 = vunpack.c.l.b16 %v403
    %v436 = vunpack.c.l.b16 %v404
    %v437 = vunpack.c.l.b16 %v405
    %v438 = vunpack.c.l.b16 %v406
    %v439 = vunpack.c.l.b16 %v407
    %v440 = vunpack.c.l.b16 %v408
    %v441 = vunpack.c.l.b16 %v409
    %v442 = vunpack.c.l.b16 %v410
    %v443 = vpack.c.b16 %v428, %v427
    %v444 = vpack.c.b16 %v430, %v429
    %v445 = vpack.c.b16 %v432, %v431
    %v446 = vpack.c.b16 %v434, %v433
    %v447 = vpack.c.b16 %v436, %v435
    %v448 = vpack.c.b16 %v438, %v437
    %v449 = vpack.c.b16 %v440, %v439
    %v450 = vpack.c.b16 %v442, %v441
    %459 = vmatpush.bf16.msra.mxu0 %v450
    %460 = vmatpush.bf16.msra.mxu0 %v449
    %461 = vmatpush.bf16.msra.mxu0 %v448
    %462 = vmatpush.bf16.msra.mxu0 %v447
    %463 = vmatpush.bf16.msra.mxu0 %v446
    %464 = vmatpush.bf16.msra.mxu0 %v445
    %465 = vmatpush.bf16.msra.mxu0 %v444
    %466 = vmatpush.bf16.msra.mxu0 %v443
    %467 = vmatmul.bf16.gmra.mxu0 %v394
    %v468 = vpop.f32.mrf.mxu0
    %v469 = vadd.f32 0.0, %v468
    %v470 = vpop.f32.mrf.mxu0
    %471 = vdwg.mxu0
    %vm472 = vcmask 64512
    %v473 = vsel %vm472, %v469, -inf
    %474 = vmax.xlane.f32.xlu0 %v473
    %v475 = vpop.xlane.xlu0 %474
    %v476 = vlaneseq
    %v477 = vand.u32 %v476, 127
    %vm478 = vcmp.eq.f32.partialorder %v469, %v475
    %v479 = vsel %vm478, %v477, 2147483647
    %v480 = vsel %vm472, %v479, 2147483647
    %v481 = vand.u32 %v480, 65535
    %v482 = vshra.s32 %v480, 16
    %v483 = vcvt.s32.f32 %v481
    %v484 = vcvt.s32.f32 %v482
    %485 = vmin.xlane.f32.xlu0 %v484
    %v486 = vpop.xlane.xlu0 %485
    %vm487 = vcmp.eq.f32.partialorder %v484, %v486
    %v488 = vsel %vm487, %v483, inf
    %489 = vmin.xlane.f32.xlu0 %v488
    %v490 = vpop.xlane.xlu0 %489
    %v491 = vcvt.f32.s32 %v490
    %v492 = vcvt.f32.s32 %v486
    %v493 = vshll.u32 %v492, 16
    %v494 = vadd.s32 %v493, %v491
    %vm495 = vcmask 130112
    %v496 = vsel %vm495, %v469, -inf
    %497 = vmax.xlane.f32.xlu0 %v496
    %v498 = vpop.xlane.xlu0 %497
    %vm499 = vcmp.eq.f32.partialorder %v469, %v498
    %500 = vrot.lane.b32.xlu0 %v477, 8
    %v501 = vpop.permute.xlu0 %500
    %v502 = vsel %vm499, %v501, 2147483647
    %v503 = vsel %vm495, %v502, 2147483647
    %v504 = vand.u32 %v503, 65535
    %v505 = vshra.s32 %v503, 16
    %v506 = vcvt.s32.f32 %v504
    %v507 = vcvt.s32.f32 %v505
    %508 = vmin.xlane.f32.xlu0 %v507
    %v509 = vpop.xlane.xlu0 %508
    %vm510 = vcmp.eq.f32.partialorder %v507, %v509
    %v511 = vsel %vm510, %v506, inf
    %512 = vmin.xlane.f32.xlu0 %v511
    %v513 = vpop.xlane.xlu0 %512
    %v514 = vcvt.f32.s32 %v513
    %v515 = vcvt.f32.s32 %v509
    %v516 = vshll.u32 %v515, 16
    %v517 = vadd.s32 %v516, %v514
    %vm518 = vcmask 195712
    %v519 = vsel %vm518, %v469, -inf
    %520 = vmax.xlane.f32.xlu0 %v519
    %v521 = vpop.xlane.xlu0 %520
    %vm522 = vcmp.eq.f32.partialorder %v469, %v521
    %523 = vrot.lane.b32.xlu0 %v477, 16
    %v524 = vpop.permute.xlu0 %523
    %v525 = vsel %vm522, %v524, 2147483647
    %v526 = vsel %vm518, %v525, 2147483647
    %v527 = vand.u32 %v526, 65535
    %v528 = vshra.s32 %v526, 16
    %v529 = vcvt.s32.f32 %v527
    %v530 = vcvt.s32.f32 %v528
    %531 = vmin.xlane.f32.xlu0 %v530
    %v532 = vpop.xlane.xlu0 %531
    %vm533 = vcmp.eq.f32.partialorder %v530, %v532
    %v534 = vsel %vm533, %v529, inf
    %535 = vmin.xlane.f32.xlu0 %v534
    %v536 = vpop.xlane.xlu0 %535
    %v537 = vcvt.f32.s32 %v536
    %v538 = vcvt.f32.s32 %v532
    %v539 = vshll.u32 %v538, 16
    %v540 = vadd.s32 %v539, %v537
    %vm541 = vcmask 261312
    %v542 = vsel %vm541, %v469, -inf
    %543 = vmax.xlane.f32.xlu0 %v542
    %v544 = vpop.xlane.xlu0 %543
    %vm545 = vcmp.eq.f32.partialorder %v469, %v544
    %546 = vrot.lane.b32.xlu0 %v477, 24
    %v547 = vpop.permute.xlu0 %546
    %v548 = vsel %vm545, %v547, 2147483647
    %v549 = vsel %vm541, %v548, 2147483647
    %v550 = vand.u32 %v549, 65535
    %v551 = vshra.s32 %v549, 16
    %v552 = vcvt.s32.f32 %v550
    %v553 = vcvt.s32.f32 %v551
    %554 = vmin.xlane.f32.xlu0 %v553
    %v555 = vpop.xlane.xlu0 %554
    %vm556 = vcmp.eq.f32.partialorder %v553, %v555
    %v557 = vsel %vm556, %v552, inf
    %558 = vmin.xlane.f32.xlu0 %v557
    %v559 = vpop.xlane.xlu0 %558
    %v560 = vcvt.f32.s32 %v559
    %v561 = vcvt.f32.s32 %v555
    %v562 = vshll.u32 %v561, 16
    %v563 = vadd.s32 %v562, %v560
    %vm564 = vcmask 326912
    %v565 = vsel %vm564, %v469, -inf
    %566 = vmax.xlane.f32.xlu0 %v565
    %v567 = vpop.xlane.xlu0 %566
    %vm568 = vcmp.eq.f32.partialorder %v469, %v567
    %569 = vrot.lane.b32.xlu0 %v477, 32
    %v570 = vpop.permute.xlu0 %569
    %v571 = vsel %vm568, %v570, 2147483647
    %v572 = vsel %vm564, %v571, 2147483647
    %v573 = vand.u32 %v572, 65535
    %v574 = vshra.s32 %v572, 16
    %v575 = vcvt.s32.f32 %v573
    %v576 = vcvt.s32.f32 %v574
    %577 = vmin.xlane.f32.xlu0 %v576
    %v578 = vpop.xlane.xlu0 %577
    %vm579 = vcmp.eq.f32.partialorder %v576, %v578
    %v580 = vsel %vm579, %v575, inf
    %581 = vmin.xlane.f32.xlu0 %v580
    %v582 = vpop.xlane.xlu0 %581
    %v583 = vcvt.f32.s32 %v582
    %v584 = vcvt.f32.s32 %v578
    %v585 = vshll.u32 %v584, 16
    %v586 = vadd.s32 %v585, %v583
    %vm587 = vcmask 392512
    %v588 = vsel %vm587, %v469, -inf
    %589 = vmax.xlane.f32.xlu0 %v588
    %v590 = vpop.xlane.xlu0 %589
    %vm591 = vcmp.eq.f32.partialorder %v469, %v590
    %592 = vrot.lane.b32.xlu0 %v477, 40
    %v593 = vpop.permute.xlu0 %592
    %v594 = vsel %vm591, %v593, 2147483647
    %v595 = vsel %vm587, %v594, 2147483647
    %v596 = vand.u32 %v595, 65535
    %v597 = vshra.s32 %v595, 16
    %v598 = vcvt.s32.f32 %v596
    %v599 = vcvt.s32.f32 %v597
    %600 = vmin.xlane.f32.xlu0 %v599
    %v601 = vpop.xlane.xlu0 %600
    %vm602 = vcmp.eq.f32.partialorder %v599, %v601
    %v603 = vsel %vm602, %v598, inf
    %604 = vmin.xlane.f32.xlu0 %v603
    %v605 = vpop.xlane.xlu0 %604
    %v606 = vcvt.f32.s32 %v605
    %v607 = vcvt.f32.s32 %v601
    %v608 = vshll.u32 %v607, 16
    %v609 = vadd.s32 %v608, %v606
    %vm610 = vcmask 458112
    %v611 = vsel %vm610, %v469, -inf
    %612 = vmax.xlane.f32.xlu0 %v611
    %v613 = vpop.xlane.xlu0 %612
    %vm614 = vcmp.eq.f32.partialorder %v469, %v613
    %615 = vrot.lane.b32.xlu0 %v477, 48
    %v616 = vpop.permute.xlu0 %615
    %v617 = vsel %vm614, %v616, 2147483647
    %v618 = vsel %vm610, %v617, 2147483647
    %v619 = vand.u32 %v618, 65535
    %v620 = vshra.s32 %v618, 16
    %v621 = vcvt.s32.f32 %v619
    %v622 = vcvt.s32.f32 %v620
    %623 = vmin.xlane.f32.xlu0 %v622
    %v624 = vpop.xlane.xlu0 %623
    %vm625 = vcmp.eq.f32.partialorder %v622, %v624
    %v626 = vsel %vm625, %v621, inf
    %627 = vmin.xlane.f32.xlu0 %v626
    %v628 = vpop.xlane.xlu0 %627
    %v629 = vcvt.f32.s32 %v628
    %v630 = vcvt.f32.s32 %v624
    %v631 = vshll.u32 %v630, 16
    %v632 = vadd.s32 %v631, %v629
    %vm633 = vcmask 523712
    %v634 = vsel %vm633, %v469, -inf
    %635 = vmax.xlane.f32.xlu0 %v634
    %v636 = vpop.xlane.xlu0 %635
    %vm637 = vcmp.eq.f32.partialorder %v469, %v636
    %638 = vrot.lane.b32.xlu0 %v477, 56
    %v639 = vpop.permute.xlu0 %638
    %v640 = vsel %vm637, %v639, 2147483647
    %v641 = vsel %vm633, %v640, 2147483647
    %v642 = vand.u32 %v641, 65535
    %v643 = vshra.s32 %v641, 16
    %v644 = vcvt.s32.f32 %v642
    %v645 = vcvt.s32.f32 %v643
    %646 = vmin.xlane.f32.xlu0 %v645
    %v647 = vpop.xlane.xlu0 %646
    %vm648 = vcmp.eq.f32.partialorder %v645, %v647
    %v649 = vsel %vm648, %v644, inf
    %650 = vmin.xlane.f32.xlu0 %v649
    %v651 = vpop.xlane.xlu0 %650
    %v652 = vcvt.f32.s32 %v651
    %v653 = vcvt.f32.s32 %v647
    %v654 = vshll.u32 %v653, 16
    %v655 = vadd.s32 %v654, %v652
    %vm656 = vcmask 7168
    %v657 = vsel %vm656, %v494, %v517
    %vm658 = vcmask 15360
    %v659 = vsel %vm658, %v657, %v540
    %vm660 = vcmask 23552
    %v661 = vsel %vm660, %v659, %v563
    %vm662 = vcmask 31744
    %v663 = vsel %vm662, %v661, %v586
    %vm664 = vcmask 39936
    %v665 = vsel %vm664, %v663, %v609
    %vm666 = vcmask 48128
    %v667 = vsel %vm666, %v665, %v632
    %vm668 = vcmask 56320
    %v669 = vsel %vm668, %v667, %v655
    %670 = vst.msk [vmem:[#allocation7] sm:$0xff] %vm472, %v669
    // Predicated region
    $region42: #{tpu_custom_call.1} parent=1 // pred_check
      _
    $region43: #{tpu_custom_call.1} parent=1 // pred_check_branch
      %672 = sbr.rel (0) target = $region45
    $region44: #{tpu_custom_call.1} parent=1 // pred_region
      %674 = vsyncadd [#allocation4], 0
      %s676 = sshll.u32 [#allocation7], 4
      %s677 = int_to_ptr.vmem [resolvable:$true] %s676
      %s678 = sshll.u32 %s8, 4
      %s679 = int_to_ptr.hbm [resolvable:$true] %s678
      %681 = dma.vmem_to_hbm [thread:$0]  %s677, 128, %s679, [#allocation4]
    $region45: #{tpu_custom_call.1} parent=1 // pred_fallthru
      _
    // Predicated region
    $region46: #{tpu_custom_call.1} parent=1 // pred_check
      _
    $region47: #{tpu_custom_call.1} parent=1 // pred_check_branch
      %683 = sbr.rel (0) target = $region49
    $region48: #{tpu_custom_call.1} parent=1 // pred_region
      %685 = dma.done [#allocation4], 128
    $region49: #{tpu_custom_call.1} parent=1 // pred_fallthru
      _
    %686 = vsyncpa [#allocation3], 1
    %687 = vsyncpa [#allocation6], 1
    %688 = vsyncpa [#allocation4], 1

</llo_original>
